<compile_context>
chip_gen: v5e
topology: v5e:2x2
jax: 0.10.0
libtpu: 0.0.40
codegen_flags: <defaults>
</compile_context>

<pallas_src>
import functools

import jax
import jax.numpy as jnp
from jax.experimental import pallas as pl
from jax.experimental.pallas import tpu as pltpu

FOCAL_EPS = 1e-6     # self.eps that CombinedLoss passes into focal_loss
ONEHOT_EPS = 1e-6    # default eps inside kornia-style one_hot()


def _int_pow(x, n):
    """x ** n for a static positive integer n via repeated multiply (VPU only)."""
    out = x
    for _ in range(n - 1):
        out = out * x
    return out


def _combined_loss_kernel(x_ref, t_ref, out_ref, *, alpha, gamma,
                          ce_weight, focal_weight, valid_p, needs_mask):
    x = x_ref[0].astype(jnp.float32)     # (C, TP) logits for this (batch, pixel-tile)
    t = t_ref[0]                         # (1, TP) int32 class ids
    C, TP = x.shape

    # --- softmax / log-softmax over the class axis (sublane axis) ---
    m = jnp.max(x, axis=0, keepdims=True)              # (1, TP)
    xm = x - m                                          # (C, TP)
    ex = jnp.exp(xm)                                    # (C, TP)  EUP
    denom = jnp.sum(ex, axis=0, keepdims=True)          # (1, TP)
    # One reciprocal per pixel instead of C divides per pixel (use approx=True
    # if the calling code can tolerate ~1e-4 relative error).
    inv_denom = pl.reciprocal(denom)                    # (1, TP)
    softmax = ex * inv_denom                            # (C, TP)  VPU multiplies
    log_softmax = xm - jnp.log(denom)                   # (C, TP); log is per-pixel

    # --- focal modulating factor; gamma==2 (default) -> single VPU multiply ---
    p_eps = softmax + FOCAL_EPS
    one_minus = 1.0 - p_eps
    if float(gamma).is_integer() and 0.0 < gamma <= 16.0:
        weight = _int_pow(one_minus, int(gamma))
    elif gamma == 0.0:
        weight = jnp.ones_like(one_minus)
    else:
        weight = jnp.power(one_minus, gamma)            # generic path (EUP exp+log)
    focal = (-alpha) * weight * jnp.log(p_eps)          # (C, TP)

    # --- fused focal + CE per-class contribution ---
    #   onehot*(fw*focal - cw*log_softmax) + fw*ONEHOT_EPS*focal
    cls_ids = jax.lax.broadcasted_iota(jnp.int32, (C, 1), 0)   # (C, 1), broadcast vs t
    onehot = cls_ids == t                                       # (C, TP) bool
    combined = jnp.where(onehot,
                         focal_weight * focal - ce_weight * log_softmax,
                         0.0)
    combined = combined + (focal_weight * ONEHOT_EPS) * focal   # (C, TP)

    # per-pixel loss: single sublane reduce over classes
    loss_px = jnp.sum(combined, axis=0, keepdims=True)          # (1, TP)

    if needs_mask:
        j = pl.program_id(1)
        lane = jax.lax.broadcasted_iota(jnp.int32, (1, TP), 1)
        valid = (j * TP + lane) < valid_p
        loss_px = jnp.where(valid, loss_px, 0.0)

    # Per-lane partial sums: fold TP lanes onto 128 lanes with static,
    # vreg-aligned slices (pure VPU adds).  The final cross-lane reduction
    # happens once, over the tiny partials array, in the wrapper.
    acc = loss_px[:, 0:128]
    for g in range(1, TP // 128):
        acc = acc + loss_px[:, g * 128:(g + 1) * 128]
    out_ref[0, 0] = acc                                         # (1, 128) partial


def _pick_tile_p(C, P, itemsize, *, max_lanes=2048, target_bytes=2 * 1024 * 1024):
    """Pixel-tile width: multiple of 128, ~<=2 MiB logits block, <=2048 lanes."""
    by_bytes = max(128, (target_bytes // max(C * itemsize, 1)) // 128 * 128)
    lanes = min(max_lanes, by_bytes)
    p_pad = ((P + 127) // 128) * 128
    return max(128, min(lanes, p_pad))


def combined_loss(logits_nchw, target_nhw, *, alpha, gamma=2.0,
                  ce_weight=0.5, focal_weight=0.5):
    """Pallas implementation of CombinedLoss.forward (reduction='mean')."""
    N, C, H, W = logits_nchw.shape
    P = H * W

    # Keep the input dtype through the DMA (bf16 stays bf16); cast in-kernel.
    x = logits_nchw.reshape(N, C, P)
    t = target_nhw.reshape(N, 1, P).astype(jnp.int32)

    TP = _pick_tile_p(C, P, x.dtype.itemsize)
    nT = pl.cdiv(P, TP)
    PP = nT * TP
    if PP != P:
        x = jnp.pad(x, ((0, 0), (0, 0), (0, PP - P)))
        t = jnp.pad(t, ((0, 0), (0, 0), (0, PP - P)))

    # TODO(synk): for very small C (<8) pack several batch items per grid step
    # to fill the 8 f32 sublanes and amortize per-step overhead.

    kernel = functools.partial(
        _combined_loss_kernel,
        alpha=float(alpha), gamma=float(gamma),
        ce_weight=float(ce_weight), focal_weight=float(focal_weight),
        valid_p=P, needs_mask=(PP != P),
    )

    partials = pl.pallas_call(
        kernel,
        out_shape=jax.ShapeDtypeStruct((N, nT, 1, 128), jnp.float32),
        grid_spec=pltpu.PrefetchScalarGridSpec(
            num_scalar_prefetch=0,
            grid=(N, nT),
            in_specs=[
                pl.BlockSpec((1, C, TP), lambda b, j: (b, 0, j)),
                pl.BlockSpec((1, 1, TP), lambda b, j: (b, 0, j)),
            ],
            out_specs=pl.BlockSpec((1, 1, 1, 128), lambda b, j: (b, j, 0, 0)),
        ),
        compiler_params=pltpu.CompilerParams(
            dimension_semantics=("parallel", "parallel"),
            vmem_limit_bytes=48 * 1024 * 1024,   # safe on v5e/v6e (128 MiB) and v7x (64 MiB)
        ),
    )(x, t)

    return jnp.sum(partials) * jnp.float32(1.0 / (N * P))


def _reference_combined_loss(logits_nchw, target_nhw, *, alpha, gamma=2.0,
                             ce_weight=0.5, focal_weight=0.5):
    """Pure-JAX reference mirroring the PyTorch module semantics."""
    x = logits_nchw.astype(jnp.float32)
    t = target_nhw.astype(jnp.int32)
    C = x.shape[1]

    softmax = jax.nn.softmax(x, axis=1)
    log_softmax = jax.nn.log_softmax(x, axis=1)
    onehot = jax.nn.one_hot(t, C, axis=1, dtype=jnp.float32)

    p_eps = softmax + FOCAL_EPS
    focal = -alpha * jnp.power(1.0 - p_eps, gamma) * jnp.log(p_eps)
    focal_px = jnp.sum((onehot + ONEHOT_EPS) * focal, axis=1)
    focal_val = jnp.mean(focal_px)

    ce_px = jnp.sum(onehot * (-log_softmax), axis=1)
    ce_val = jnp.mean(ce_px)

    return focal_weight * focal_val + ce_weight * ce_val


if __name__ == "__main__":
    key = jax.random.PRNGKey(0)
    k1, k2 = jax.random.split(key)

    N, C, H, W = 2, 4, 16, 16
    logits = jax.random.normal(k1, (N, C, H, W), dtype=jnp.float32)
    target = jax.random.randint(k2, (N, H, W), 0, C, dtype=jnp.int32)

    alpha, gamma, ce_w, focal_w = 0.25, 2.0, 0.5, 0.5

    out = combined_loss(logits, target, alpha=alpha, gamma=gamma,
                        ce_weight=ce_w, focal_weight=focal_w)
    out = jax.block_until_ready(out)

    ref = _reference_combined_loss(logits, target, alpha=alpha, gamma=gamma,
                                   ce_weight=ce_w, focal_weight=focal_w)
    assert jnp.allclose(out, ref, rtol=1e-4, atol=1e-5), (out, ref)

    print("KERNEL_OK")
</pallas_src>

<mosaic_0001>
module attributes {stable_mosaic.version = 11 : i64} {
  func.func @_combined_loss_kernel(%arg0: i32, %arg1: i32, %arg2: memref<1x4x256xf32, #tpu.memory_space<vmem>>, %arg3: memref<1x1x256xi32, #tpu.memory_space<vmem>>, %arg4: memref<1x1x1x128xf32, #tpu.memory_space<vmem>>) attributes {dimension_semantics = [#tpu.dimension_semantics<parallel>, #tpu.dimension_semantics<parallel>], iteration_bounds = array<i64: 2, 1>, scalar_prefetch = 0 : i64, scratch_operands = 0 : i64, tpu.core_type = #tpu.core_type<tc>, window_params = [{transform_indices = @transform_0, window_bounds = array<i64: 1, 4, 256>}, {transform_indices = @transform_1, window_bounds = array<i64: 1, 1, 256>}, {transform_indices = @transform_2, window_bounds = array<i64: 1, 1, 1, 128>}]} {
    %c0 = arith.constant 0 : index
    %c0_0 = arith.constant 0 : index
    %c0_1 = arith.constant 0 : index
    %0 = vector.load %arg2[%c0, %c0_0, %c0_1] : memref<1x4x256xf32, #tpu.memory_space<vmem>>, vector<1x4x256xf32>
    %1 = vector.shape_cast %0 : vector<1x4x256xf32> to vector<4x256xf32>
    %c0_2 = arith.constant 0 : index
    %c0_3 = arith.constant 0 : index
    %c0_4 = arith.constant 0 : index
    %2 = vector.load %arg3[%c0_2, %c0_3, %c0_4] : memref<1x1x256xi32, #tpu.memory_space<vmem>>, vector<1x1x256xi32>
    %3 = vector.shape_cast %2 : vector<1x1x256xi32> to vector<1x256xi32>
    %cst = arith.constant dense<0xFF800000> : vector<256xf32>
    %4 = vector.multi_reduction <maximumf>, %1, %cst [0] : vector<4x256xf32> to vector<256xf32>
    %5 = vector.shape_cast %4 : vector<256xf32> to vector<1x256xf32>
    %6 = vector.broadcast %5 : vector<1x256xf32> to vector<4x256xf32>
    %7 = arith.subf %1, %6 : vector<4x256xf32>
    %8 = math.exp %7 : vector<4x256xf32>
    %cst_5 = arith.constant dense<0.000000e+00> : vector<256xf32>
    %9 = vector.multi_reduction <add>, %8, %cst_5 [0] : vector<4x256xf32> to vector<256xf32>
    %10 = vector.shape_cast %9 : vector<256xf32> to vector<1x256xf32>
    %11 = tpu.reciprocal %10 : vector<1x256xf32> -> vector<1x256xf32>
    %12 = vector.broadcast %11 : vector<1x256xf32> to vector<4x256xf32>
    %13 = arith.mulf %8, %12 : vector<4x256xf32>
    %14 = math.log %10 : vector<1x256xf32>
    %15 = vector.broadcast %14 : vector<1x256xf32> to vector<4x256xf32>
    %16 = arith.subf %7, %15 : vector<4x256xf32>
    %cst_6 = arith.constant 9.99999997E-7 : f32
    %17 = vector.broadcast %cst_6 : f32 to vector<4x256xf32>
    %18 = arith.addf %13, %17 : vector<4x256xf32>
    %cst_7 = arith.constant 1.000000e+00 : f32
    %19 = vector.broadcast %cst_7 : f32 to vector<4x256xf32>
    %20 = arith.subf %19, %18 : vector<4x256xf32>
    %21 = arith.mulf %20, %20 : vector<4x256xf32>
    %cst_8 = arith.constant -2.500000e-01 : f32
    %22 = vector.broadcast %cst_8 : f32 to vector<4x256xf32>
    %23 = arith.mulf %22, %21 : vector<4x256xf32>
    %24 = math.log %18 : vector<4x256xf32>
    %25 = arith.mulf %23, %24 : vector<4x256xf32>
    %26 = tpu.iota {dimensions = array<i32: 0>} : vector<4x1xi32>
    %27 = vector.broadcast %26 : vector<4x1xi32> to vector<4x256xi32>
    %28 = vector.broadcast %3 : vector<1x256xi32> to vector<4x256xi32>
    %29 = arith.cmpi eq, %27, %28 : vector<4x256xi32>
    %cst_9 = arith.constant 5.000000e-01 : f32
    %30 = vector.broadcast %cst_9 : f32 to vector<4x256xf32>
    %31 = arith.mulf %30, %25 : vector<4x256xf32>
    %cst_10 = arith.constant 5.000000e-01 : f32
    %32 = vector.broadcast %cst_10 : f32 to vector<4x256xf32>
    %33 = arith.mulf %32, %16 : vector<4x256xf32>
    %34 = arith.subf %31, %33 : vector<4x256xf32>
    %cst_11 = arith.constant 0.000000e+00 : f32
    %35 = vector.broadcast %cst_11 : f32 to vector<4x256xf32>
    %36 = arith.select %29, %34, %35 : vector<4x256xi1>, vector<4x256xf32>
    %cst_12 = arith.constant 5.000000e-07 : f32
    %37 = vector.broadcast %cst_12 : f32 to vector<4x256xf32>
    %38 = arith.mulf %37, %25 : vector<4x256xf32>
    %39 = arith.addf %36, %38 : vector<4x256xf32>
    %cst_13 = arith.constant dense<0.000000e+00> : vector<256xf32>
    %40 = vector.multi_reduction <add>, %39, %cst_13 [0] : vector<4x256xf32> to vector<256xf32>
    %41 = vector.shape_cast %40 : vector<256xf32> to vector<1x256xf32>
    %42 = vector.extract_strided_slice %41 {offsets = [0, 0], sizes = [1, 128], strides = [1, 1]} : vector<1x256xf32> to vector<1x128xf32>
    %43 = vector.extract_strided_slice %41 {offsets = [0, 128], sizes = [1, 128], strides = [1, 1]} : vector<1x256xf32> to vector<1x128xf32>
    %44 = arith.addf %42, %43 : vector<1x128xf32>
    %c0_14 = arith.constant 0 : index
    %c0_15 = arith.constant 0 : index
    %c0_16 = arith.constant 0 : index
    %c0_17 = arith.constant 0 : index
    %45 = vector.load %arg4[%c0_14, %c0_15, %c0_16, %c0_17] : memref<1x1x1x128xf32, #tpu.memory_space<vmem>>, vector<1x1x1x128xf32>
    %46 = vector.shape_cast %45 : vector<1x1x1x128xf32> to vector<1x128xf32>
    %47 = vector.shape_cast %44 : vector<1x128xf32> to vector<1x1x1x128xf32>
    tpu.vector_store %arg4[%c0_14, %c0_15, %c0_16, %c0_17], %47 {strides = array<i32>} : memref<1x1x1x128xf32, #tpu.memory_space<vmem>>, vector<1x1x1x128xf32>,
    return
  }
  func.func @transform_0(%arg0: i32, %arg1: i32) -> (i32, i32, i32) {
    %c0_i32 = arith.constant 0 : i32
    %c0_i32_0 = arith.constant 0 : i32
    return %arg0, %c0_i32, %arg1 : i32, i32, i32
  }
  func.func @transform_1(%arg0: i32, %arg1: i32) -> (i32, i32, i32) {
    %c0_i32 = arith.constant 0 : i32
    %c0_i32_0 = arith.constant 0 : i32
    return %arg0, %c0_i32, %arg1 : i32, i32, i32
  }
  func.func @transform_2(%arg0: i32, %arg1: i32) -> (i32, i32, i32, i32) {
    %c0_i32 = arith.constant 0 : i32
    %c0_i32_0 = arith.constant 0 : i32
    %c0_i32_1 = arith.constant 0 : i32
    return %arg0, %arg1, %c0_i32, %c0_i32_0 : i32, i32, i32, i32
  }
}

</mosaic_0001>

<llo_original>
// kernel: tpu_custom_call.1
$region0: #{tpu_custom_call.1}
  #allocation0 [shape = 'u32[]', space=smem, size = 0x4, offset = 0x4, fixed_abs, tag = 'smem constant byte address 0x4 - core index']
  #allocation1 [shape = 'u32[72,128]{1,0:T(1,128)}', space=vmem, size = 0x9000, scoped, tag = 'internal scratch']
  %s0 = inlined_call_operand.hbm [shape: f32[2,4,256], index: 0, kind: input, shape index: {}]
  %s1 = inlined_call_operand.hbm [shape: s32[2,1,256], index: 1, kind: input, shape index: {}]
  %s2 = inlined_call_operand.hbm [shape: f32[2,1,1,128], index: 2, kind: output, shape index: {}]
  %s3 = sld [smem:[#allocation0]]
  $region49: #{tpu_custom_call.1} parent=0
    _
  %s5 = ssub.s32 1, %s3
  %s6 = scalar_select 0, %s5, %s3
  $region1: #{tpu_custom_call.1} parent=0
    #allocation2 [shape = 'u8[8192]{0}', space=vmem, size = 0x2000, scoped, tag = 'input window, operand 0']
    #allocation3 [shape = 's32[2]{0}', space=sflag, size = 0x8, scoped, tag = 'scoped memory for tpu_custom_call.1']
    #allocation4 [shape = 's32[2]{0}', space=sflag, size = 0x8, scoped, tag = 'scoped memory for tpu_custom_call.1']
    #allocation5 [shape = 'u8[2048]{0}', space=vmem, size = 0x800, scoped, tag = 'input window, operand 1']
    #allocation6 [shape = 's32[2]{0}', space=sflag, size = 0x8, scoped, tag = 'scoped memory for tpu_custom_call.1']
    #allocation7 [shape = 'u8[1024]{0}', space=vmem, size = 0x400, scoped, tag = 'output window, operand 0']
    %7 = vsyncpa [#allocation3], 0
    %s8 = scalar_lea.sflag [#allocation3], 1
    %9 = vsyncpa %s8, 0
    %10 = vsyncpa [#allocation6], 0
    %s11 = scalar_lea.sflag [#allocation6], 1
    %12 = vsyncpa %s11, 0
    %13 = vsyncpa [#allocation4], 0
    %s14 = scalar_lea.sflag [#allocation4], 1
    %15 = vsyncpa %s14, 0
    loop: start=0, step=1, limit=4
    $region2: #{tpu_custom_call.1} parent=1 // loop_pre_header
      _
    $region3: #{tpu_custom_call.1} parent=1 // loop_header
      %s17 = sphi 0, %s21
      %p18 = scmp.ge.s32.totalorder %s17, 4
      %s24 = sphi 0, %s36
      %s25 = sphi 0, %s32
      %s26 = sphi 0, %s24
      %s27 = sphi 0, %s25
      %s28 = sphi 0, %s26
      %s29 = sphi 0, %s27
      %s41 = sphi 0, %s43
      %s44 = sphi 0, %s41
      %s45 = sphi 0, %s44
      %s61 = sphi 0, %s45
      %s69 = sphi 0, %s71
      %s72 = sphi 0, %s69
      %s73 = sphi 0, %s72
      %s89 = sphi 0, %s73
      %s97 = sphi 0, %s99
      %s100 = sphi 0, %s97
      %s101 = sphi 0, %s100
      %s117 = sphi 0, %s101
    $region4: #{tpu_custom_call.1} parent=1 // loop_header_branch
      %20 = sbr.rel (%p18) target = $region8
    $region5: #{tpu_custom_call.1} parent=1 // loop_body
      %s22 = ssub.s32 %s17, 1
      %s23 = ssub.s32 %s17, 2
      %s30 = sadd.s32 1, %s25
      %p31 = scmp.ge.s32.totalorder %s30, 1
      %s32 = scalar_select %p31, 0, %s30
      %s33 = sadd.s32 1, %s24
      %s34 = scalar_select %p31, %s33, %s24
      %p35 = scmp.ge.s32.totalorder %s34, 2
      %s36 = scalar_select %p35, 0, %s34
      %s37 = ssub.s32 %s24, %s36
      %s38 = ssub.s32 %s25, %s32
      %s39 = sor.u32 %s37, %s38
      %p40 = scmp.eq.s32.totalorder %s39, 0
      %s42 = sadd.s32 %s41, 1
      %s43 = scalar_select %p40, %s41, %s42
      %p46 = pneg %p40
      %p47 = scmp.eq.s32.totalorder %s17, 1
      %p48 = por %p46, %p47
      %p49 = scmp.ne.s32.totalorder %s41, %s44
      %p50 = scmp.eq.s32.totalorder %s17, 0
      %p51 = por %p49, %p50
      %p52 = scmp.ne.s32.totalorder %s41, %s44
      %p53 = scmp.eq.s32.totalorder %s22, 1
      %p54 = por %p52, %p53
      %p55 = scmp.ne.s32.totalorder %s44, %s45
      %p56 = scmp.eq.s32.totalorder %s22, 0
      %p57 = por %p55, %p56
      %p58 = scmp.ne.s32.totalorder %s44, %s45
      %p59 = scmp.eq.s32.totalorder %s23, 1
      %p60 = por %p58, %p59
      %p62 = scmp.ne.s32.totalorder %s45, %s61
      %p63 = scmp.eq.s32.totalorder %s23, 0
      %p64 = por %p62, %p63
      %s65 = ssub.s32 %s24, %s36
      %s66 = ssub.s32 %s25, %s32
      %s67 = sor.u32 %s65, %s66
      %p68 = scmp.eq.s32.totalorder %s67, 0
      %s70 = sadd.s32 %s69, 1
      %s71 = scalar_select %p68, %s69, %s70
      %p74 = pneg %p68
      %p75 = scmp.eq.s32.totalorder %s17, 1
      %p76 = por %p74, %p75
      %p77 = scmp.ne.s32.totalorder %s69, %s72
      %p78 = scmp.eq.s32.totalorder %s17, 0
      %p79 = por %p77, %p78
      %p80 = scmp.ne.s32.totalorder %s69, %s72
      %p81 = scmp.eq.s32.totalorder %s22, 1
      %p82 = por %p80, %p81
      %p83 = scmp.ne.s32.totalorder %s72, %s73
      %p84 = scmp.eq.s32.totalorder %s22, 0
      %p85 = por %p83, %p84
      %p86 = scmp.ne.s32.totalorder %s72, %s73
      %p87 = scmp.eq.s32.totalorder %s23, 1
      %p88 = por %p86, %p87
      %p90 = scmp.ne.s32.totalorder %s73, %s89
      %p91 = scmp.eq.s32.totalorder %s23, 0
      %p92 = por %p90, %p91
      %s93 = ssub.s32 %s24, %s36
      %s94 = ssub.s32 %s25, %s32
      %s95 = sor.u32 %s93, %s94
      %p96 = scmp.eq.s32.totalorder %s95, 0
      %s98 = sadd.s32 %s97, 1
      %s99 = scalar_select %p96, %s97, %s98
      %p102 = pneg %p96
      %p103 = scmp.eq.s32.totalorder %s17, 1
      %p104 = por %p102, %p103
      %p105 = scmp.ne.s32.totalorder %s97, %s100
      %p106 = scmp.eq.s32.totalorder %s17, 0
      %p107 = por %p105, %p106
      %p108 = scmp.ne.s32.totalorder %s97, %s100
      %p109 = scmp.eq.s32.totalorder %s22, 1
      %p110 = por %p108, %p109
      %p111 = scmp.ne.s32.totalorder %s100, %s101
      %p112 = scmp.eq.s32.totalorder %s22, 0
      %p113 = por %p111, %p112
      %p114 = scmp.ne.s32.totalorder %s100, %s101
      %p115 = scmp.eq.s32.totalorder %s23, 1
      %p116 = por %p114, %p115
      %p118 = scmp.ne.s32.totalorder %s101, %s117
      %p119 = scmp.eq.s32.totalorder %s23, 0
      %p120 = por %p118, %p119
      %p121 = scmp.le.s32.totalorder 1, %s17
      %p122 = scmp.lt.s32.totalorder %s17, 3
      %p123 = pnand %p121, %p122
      %p124 = pneg %p123
      // Predicated region
      $region9: #{tpu_custom_call.1} parent=5 // pred_check
        _
      $region10: #{tpu_custom_call.1} parent=5 // pred_check_branch
        %126 = sbr.rel (%p123) target = $region12
      $region11: #{tpu_custom_call.1} parent=5 // pred_region
        %s127 = ssub.s32 %s17, 1
      $region12: #{tpu_custom_call.1} parent=5 // pred_fallthru
        _
      %p128 = scmp.lt.s32.totalorder %s17, 2
      // Predicated region
      $region13: #{tpu_custom_call.1} parent=5 // pred_check
        %p129 = pneg %p128
      $region14: #{tpu_custom_call.1} parent=5 // pred_check_branch
        %131 = sbr.rel (%p129) target = $region16
      $region15: #{tpu_custom_call.1} parent=5 // pred_region
        // Predicated region
        $region17: #{tpu_custom_call.1} parent=15 // pred_check
          %p132 = pneg %p51
        $region18: #{tpu_custom_call.1} parent=15 // pred_check_branch
          %134 = sbr.rel (%p132) target = $region20
        $region19: #{tpu_custom_call.1} parent=15 // pred_region
          %s135 = sand.u32 %s41, 1
          %s136 = scalar_lea.sflag [#allocation3], %s135
          %s137 = sand.u32 %s41, 1
          %s138 = smul.addr %s137, 8
          %s139 = scalar_lea.vmem [#allocation2], %s138
          %s140 = smul.u32 2, %s25
          %142 = vsyncadd %s136, 0
          %s143 = smul.addr %s24, 2
          %s144 = sadd.s32 %s140, %s143
          %s145 = smul.addr %s144, 4
          %s146 = scalar_lea.hbm %s0, %s145
          %s148 = sshll.u32 %s146, 4
          %s149 = int_to_ptr.hbm [resolvable:$true] %s148
          %s150 = sshll.u32 %s139, 4
          %s151 = int_to_ptr.vmem [resolvable:$true] %s150
          %153 = dma.hbm_to_vmem [thread:$0]  %s149, 128, %s151, %s136
        $region20: #{tpu_custom_call.1} parent=15 // pred_fallthru
          _
        // Predicated region
        $region21: #{tpu_custom_call.1} parent=15 // pred_check
          %p154 = pneg %p79
        $region22: #{tpu_custom_call.1} parent=15 // pred_check_branch
          %156 = sbr.rel (%p154) target = $region24
        $region23: #{tpu_custom_call.1} parent=15 // pred_region
          %s157 = sand.u32 %s69, 1
          %s158 = scalar_lea.sflag [#allocation6], %s157
          %s159 = sand.u32 %s69, 1
          %s160 = smul.addr %s159, 2
          %s161 = scalar_lea.vmem [#allocation5], %s160
          %s162 = smul.u32 2, %s25
          %164 = vsyncadd %s158, 0
          %s165 = smul.addr %s24, 2
          %s166 = sadd.s32 %s162, %s165
          %s167 = scalar_lea.hbm %s1, %s166
          %s169 = sshll.u32 %s167, 4
          %s170 = int_to_ptr.hbm [resolvable:$true] %s169
          %s171 = sshll.u32 %s161, 4
          %s172 = int_to_ptr.vmem [resolvable:$true] %s171
          %174 = dma.hbm_to_vmem [thread:$0]  %s170, 32, %s172, %s158
        $region24: #{tpu_custom_call.1} parent=15 // pred_fallthru
          _
      $region16: #{tpu_custom_call.1} parent=5 // pred_fallthru
        _
      %p175 = scmp.le.s32.totalorder 1, %s17
      %p176 = scmp.lt.s32.totalorder %s17, 3
      %p177 = pnand %p175, %p176
      %p178 = pneg %p177
      // Predicated region
      $region25: #{tpu_custom_call.1} parent=5 // pred_check
        _
      $region26: #{tpu_custom_call.1} parent=5 // pred_check_branch
        %180 = sbr.rel (%p177) target = $region28
      $region27: #{tpu_custom_call.1} parent=5 // pred_region
        %s181 = ssub.s32 %s17, 1
        %s182 = sand.u32 %s44, 1
        %s183 = scalar_lea.sflag [#allocation3], %s182
        %s184 = sand.u32 %s44, 1
        %s185 = smul.addr %s184, 8
        %s186 = scalar_lea.vmem [#allocation2], %s185
        // Predicated region
        $region29: #{tpu_custom_call.1} parent=27 // pred_check
          %p187 = pneg %p57
        $region30: #{tpu_custom_call.1} parent=27 // pred_check_branch
          %189 = sbr.rel (%p187) target = $region32
        $region31: #{tpu_custom_call.1} parent=27 // pred_region
          %191 = dma.done %s183, 128
        $region32: #{tpu_custom_call.1} parent=27 // pred_fallthru
          _
        %s192 = sand.u32 %s72, 1
        %s193 = scalar_lea.sflag [#allocation6], %s192
        %s194 = sand.u32 %s72, 1
        %s195 = smul.addr %s194, 2
        %s196 = scalar_lea.vmem [#allocation5], %s195
        // Predicated region
        $region33: #{tpu_custom_call.1} parent=27 // pred_check
          %p197 = pneg %p85
        $region34: #{tpu_custom_call.1} parent=27 // pred_check_branch
          %199 = sbr.rel (%p197) target = $region36
        $region35: #{tpu_custom_call.1} parent=27 // pred_region
          %201 = dma.done %s193, 32
        $region36: #{tpu_custom_call.1} parent=27 // pred_fallthru
          _
        %s202 = sand.u32 %s44, 1
        %s203 = scalar_lea.sflag [#allocation3], %s202
        %s204 = sand.u32 %s44, 1
        %s205 = smul.addr %s204, 8
        %s206 = scalar_lea.vmem [#allocation2], %s205
        %p207 = pneg %p57
        %p208 = pneg %p54
        %s209 = sand.u32 %s72, 1
        %s210 = scalar_lea.sflag [#allocation6], %s209
        %s211 = sand.u32 %s72, 1
        %s212 = smul.addr %s211, 2
        %s213 = scalar_lea.vmem [#allocation5], %s212
        %p214 = pneg %p85
        %p215 = pneg %p82
        %p216 = pneg %p113
        %p217 = pneg %p110
        %s218 = sand.u32 %s100, 1
        %s219 = scalar_lea.sflag [#allocation4], %s218
        %s220 = sand.u32 %s100, 1
        %s221 = scalar_lea.vmem [#allocation7], %s220
        %s222 = smul.u32 2, %s27
        %s223 = smul.u32 2, %s27
        %v224 = vld [vmem:[%s186] sm:$0xff]
        %v225 = vld [vmem:[%s196] sm:$0x3]
        %227 = vst [vmem:[#allocation1] ss:$2 sm:$0xff] %v224
        %v228 = vld.sshfl [vmem:[#allocation1] sm:$0xff pattern:$0x75316420]
        %v229 = vld.sshfl [vmem:[#allocation1 + $0x8] sm:$0xff pattern:$0x75316420]
        %vm232 = vcmask 1043456
        %v233 = vsel %vm232, %v228, -inf
        %v234 = vrot.slane %v233, 4
        %v235 = vmax.f32 %v233, %v234
        %v236 = vrot.slane %v235, 2
        %v237 = vmax.f32 %v235, %v236
        %v238 = vrot.slane %v237, 1
        %v239 = vmax.f32 %v237, %v238
        %v240 = vsel %vm232, %v229, -inf
        %v241 = vrot.slane %v240, 4
        %v242 = vmax.f32 %v240, %v241
        %v243 = vrot.slane %v242, 2
        %v244 = vmax.f32 %v242, %v243
        %v245 = vrot.slane %v244, 1
        %v246 = vmax.f32 %v244, %v245
        %v249 = vrot.slane %v246, 4
        %v250 = vsel %vm232, %v239, %v249
        %v252 = vsub.f32 %v224, %v250
        %v253 = vmul.f32 %v252, 1.442695
        %v254 = vpow.pop %v253
        %256 = vst [vmem:[#allocation1] ss:$2 sm:$0xff] %v254
        %v257 = vld.sshfl [vmem:[#allocation1] sm:$0xff pattern:$0x75316420]
        %v258 = vld.sshfl [vmem:[#allocation1 + $0x8] sm:$0xff pattern:$0x75316420]
        %v261 = vsel %vm232, %v257, 0.0
        %v262 = vrot.slane %v261, 4
        %v263 = vadd.f32 %v261, %v262
        %v264 = vrot.slane %v263, 2
        %v265 = vadd.f32 %v263, %v264
        %v266 = vrot.slane %v265, 1
        %v267 = vadd.f32 %v265, %v266
        %v268 = vsel %vm232, %v258, 0.0
        %v269 = vrot.slane %v268, 4
        %v270 = vadd.f32 %v268, %v269
        %v271 = vrot.slane %v270, 2
        %v272 = vadd.f32 %v270, %v271
        %v273 = vrot.slane %v272, 1
        %v274 = vadd.f32 %v272, %v273
        %v275 = vrcp.pop %v267
        %v276 = vmul.f32 %v267, %v275
        %v277 = vsub.f32 1.0, %v276
        %v278 = vmul.f32 %v275, %v277
        %v279 = vadd.f32 %v275, %v278
        %vm280 = vweird.f32 %v267
        %vm281 = vweird.f32 %v275
        %vm282 = vmor %vm280, %vm281
        %v283 = vsel %vm282, %v275, %v279
        %v284 = vand.u32 2147483647, %v267
        %vm285 = vcmp.eq.f32.partialorder %v284, 8.507059e+37
        %v286 = vand.u32 %v267, 2147483648
        %v287 = vor.u32 1.1754944e-38, %v286
        %v288 = vsel %vm285, %v287, %v283
        %v289 = vrcp.pop %v274
        %v290 = vmul.f32 %v274, %v289
        %v291 = vsub.f32 1.0, %v290
        %v292 = vmul.f32 %v289, %v291
        %v293 = vadd.f32 %v289, %v292
        %vm294 = vweird.f32 %v274
        %vm295 = vweird.f32 %v289
        %vm296 = vmor %vm294, %vm295
        %v297 = vsel %vm296, %v289, %v293
        %v298 = vand.u32 2147483647, %v274
        %vm299 = vcmp.eq.f32.partialorder %v298, 8.507059e+37
        %v300 = vand.u32 %v274, 2147483648
        %v301 = vor.u32 1.1754944e-38, %v300
        %v302 = vsel %vm299, %v301, %v297
        %v305 = vrot.slane %v302, 4
        %v306 = vsel %vm232, %v288, %v305
        %v308 = vmul.f32 %v254, %v306
        %v309 = vlog2.pop %v267
        %v310 = vmul.f32 %v309, 0.6931472
        %v311 = vlog2.pop %v274
        %v312 = vmul.f32 %v311, 0.6931472
        %v315 = vrot.slane %v312, 4
        %v316 = vsel %vm232, %v310, %v315
        %v318 = vsub.f32 %v252, %v316
        %v319 = vadd.f32 %v308, 1e-06
        %v320 = vsub.f32 1.0, %v319
        %v321 = vmul.f32 %v320, %v320
        %v322 = vmul.f32 %v321, -0.25
        %v323 = vlog2.pop %v319
        %v324 = vmul.f32 %v323, 0.6931472
        %v325 = vmul.f32 %v322, %v324
        %v326 = vlaneseq
        %v327 = vshrl.u32 %v326, 7
        %v328 = vperm.slane %v225, 0
        %v329 = vperm.slane %v225, 1
        %vm330 = vcmp.eq.s32.totalorder %v327, %v328
        %vm331 = vcmp.eq.s32.totalorder %v327, %v329
        %v332 = vmul.f32 %v325, 0.5
        %v333 = vmul.f32 %v318, 0.5
        %v334 = vsub.f32 %v332, %v333
        %336 = vst [vmem:[#allocation1] ss:$2 sm:$0xff] %v334
        %v337 = vld.sshfl [vmem:[#allocation1] sm:$0xff pattern:$0x75316420]
        %v338 = vld.sshfl [vmem:[#allocation1 + $0x8] sm:$0xff pattern:$0x75316420]
        %v341 = vsel %vm330, %v337, 0.0
        %v342 = vsel %vm331, %v338, 0.0
        %v343 = vmul.f32 %v325, 5e-07
        %345 = vst [vmem:[#allocation1] ss:$2 sm:$0xff] %v343
        %v346 = vld.sshfl [vmem:[#allocation1] sm:$0xff pattern:$0x75316420]
        %v347 = vld.sshfl [vmem:[#allocation1 + $0x8] sm:$0xff pattern:$0x75316420]
        %v350 = vadd.f32 %v341, %v346
        %v351 = vadd.f32 %v342, %v347
        %v352 = vsel %vm232, %v350, 0.0
        %v353 = vrot.slane %v352, 4
        %v354 = vadd.f32 %v352, %v353
        %v355 = vrot.slane %v354, 2
        %v356 = vadd.f32 %v354, %v355
        %v357 = vrot.slane %v356, 1
        %v358 = vadd.f32 %v356, %v357
        %v359 = vsel %vm232, %v351, 0.0
        %v360 = vrot.slane %v359, 4
        %v361 = vadd.f32 %v359, %v360
        %v362 = vrot.slane %v361, 2
        %v363 = vadd.f32 %v361, %v362
        %v364 = vrot.slane %v363, 1
        %v365 = vadd.f32 %v363, %v364
        %v366 = vadd.f32 %v358, %v365
        %367 = vst [vmem:[%s221] sm:$0x1] %v366
        %s368 = sand.u32 %s100, 1
        %s369 = scalar_lea.sflag [#allocation4], %s368
        %s370 = sand.u32 %s100, 1
        %s371 = scalar_lea.vmem [#allocation7], %s370
        // Predicated region
        $region37: #{tpu_custom_call.1} parent=27 // pred_check
          %p372 = pneg %p110
        $region38: #{tpu_custom_call.1} parent=27 // pred_check_branch
          %374 = sbr.rel (%p372) target = $region40
        $region39: #{tpu_custom_call.1} parent=27 // pred_region
          %376 = vsyncadd %s369, 0
          %s377 = sadd.s32 %s27, %s26
          %s378 = scalar_lea.hbm %s2, %s377
          %s380 = sshll.u32 %s371, 4
          %s381 = int_to_ptr.vmem [resolvable:$true] %s380
          %s382 = sshll.u32 %s378, 4
          %s383 = int_to_ptr.hbm [resolvable:$true] %s382
          %385 = dma.vmem_to_hbm [thread:$0]  %s381, 16, %s383, %s369
        $region40: #{tpu_custom_call.1} parent=27 // pred_fallthru
          _
      $region28: #{tpu_custom_call.1} parent=5 // pred_fallthru
        _
      %p386 = scmp.le.s32.totalorder 2, %s17
      // Predicated region
      $region41: #{tpu_custom_call.1} parent=5 // pred_check
        %p387 = pneg %p386
      $region42: #{tpu_custom_call.1} parent=5 // pred_check_branch
        %389 = sbr.rel (%p387) target = $region44
      $region43: #{tpu_custom_call.1} parent=5 // pred_region
        %s390 = ssub.s32 %s17, 2
        // Predicated region
        $region45: #{tpu_custom_call.1} parent=43 // pred_check
          %p391 = pneg %p116
        $region46: #{tpu_custom_call.1} parent=43 // pred_check_branch
          %393 = sbr.rel (%p391) target = $region48
        $region47: #{tpu_custom_call.1} parent=43 // pred_region
          %s394 = sand.u32 %s101, 1
          %s395 = scalar_lea.sflag [#allocation4], %s394
          %s396 = sand.u32 %s101, 1
          %s397 = scalar_lea.vmem [#allocation7], %s396
          %399 = dma.done %s395, 16
        $region48: #{tpu_custom_call.1} parent=43 // pred_fallthru
          _
      $region44: #{tpu_custom_call.1} parent=5 // pred_fallthru
        _
    $region6: #{tpu_custom_call.1} parent=1 // loop_footer
      %s21 = sadd.s32 1, %s17
    $region7: #{tpu_custom_call.1} parent=1 // loop_footer_branch
      %16 = sbr.rel target = $region3
    $region8: #{tpu_custom_call.1} parent=1 // loop_exit
      _
    %400 = vsyncpa [#allocation3], 1
    %s401 = scalar_lea.sflag [#allocation3], 1
    %402 = vsyncpa %s401, 1
    %403 = vsyncpa [#allocation6], 1
    %s404 = scalar_lea.sflag [#allocation6], 1
    %405 = vsyncpa %s404, 1
    %406 = vsyncpa [#allocation4], 1
    %s407 = scalar_lea.sflag [#allocation4], 1
    %408 = vsyncpa %s407, 1

</llo_original>
